<compile_context>
chip_gen: v5e
topology: v5e:2x2
jax: 0.10.0
libtpu: 0.0.40
codegen_flags: <defaults>
</compile_context>

<pallas_src>
import functools
import numpy as np
import jax
import jax.numpy as jnp
from jax import lax
from jax.experimental import pallas as pl
from jax.experimental.pallas import tpu as pltpu


def _round_up(x, m):
    return (x + m - 1) // m * m


def _pick_tn(n_padded):
    """N tile: full N (grid=(1,)) on single-TC chips, 128 on 2-TC v7x."""
    try:
        kind = jax.devices()[0].device_kind.lower()
    except Exception:
        kind = ""
    if (("v7" in kind) or ("7x" in kind)) and n_padded >= 256:
        return 128
    return n_padded


# ----------------------------------------------------------------------------
# One-time parameter preparation ("init"). Nothing here runs per forward call.
#   w:     (N, K) PyTorch Linear weight (out_features, in_features)
#   bias / gamma / beta: (N,)
# Returns:
#   w_t    : (K, Np) bf16, pre-transposed + padded
#   params : (3, Np) f32, rows = [bias, gamma, beta]
#   n_out  : N (real output width)
# ----------------------------------------------------------------------------
def init_feat_bottleneck_params(w, bias, gamma, beta):
    N, K = w.shape
    Np = _round_up(max(N, 128), 128)
    w_t = jnp.zeros((K, Np), jnp.bfloat16).at[:, :N].set(
        jnp.asarray(w).T.astype(jnp.bfloat16))
    params = jnp.zeros((3, Np), jnp.float32)
    params = params.at[0, :N].set(jnp.asarray(bias, jnp.float32))
    params = params.at[1, :N].set(jnp.asarray(gamma, jnp.float32))
    params = params.at[2, :N].set(jnp.asarray(beta, jnp.float32))
    return w_t, params, N


# ----------------------------------------------------------------------------
# Fused Linear + (training-mode) BatchNorm1d kernel.
#   grid = (Np // tn,)  -- N tiles only; the full K reduction happens in one
#   jnp.dot (whole problem fits VMEM easily), so there is no accumulator
#   scratch, no K-step init and no gated store.
# ----------------------------------------------------------------------------
def _fused_linear_bn_kernel(x_ref, wt_ref, p_ref, o_ref, *, batch, eps, apply_bn):
    # x arrives as f32; cast to bf16 in VMEM (cheap VPU cast, no extra HBM op).
    xb = x_ref[...].astype(jnp.bfloat16)
    z = jnp.dot(xb, wt_ref[...], preferred_element_type=jnp.float32)
    z = z + p_ref[0:1, :]                                      # + bias

    if apply_bn:
        # Mask rows beyond the real batch (padded rows hold 0 @ W + bias).
        rows = lax.broadcasted_iota(jnp.int32, z.shape, 0)
        valid = rows < batch
        inv_b = 1.0 / float(batch)
        zv = jnp.where(valid, z, 0.0)
        mean = jnp.sum(zv, axis=0, keepdims=True) * inv_b
        d = jnp.where(valid, z - mean, 0.0)
        var = jnp.sum(d * d, axis=0, keepdims=True) * inv_b    # two-pass, biased
        inv_std = lax.rsqrt(var + eps)
        z = (z - mean) * (p_ref[1:2, :] * inv_std) + p_ref[2:3, :]

    o_ref[...] = z.astype(o_ref.dtype)


def feat_bottleneck_forward(x, w_t, params, n_out, *, bn_type='bn',
                            eps=1e-5, tn=None):
    """x: (B, K) f32 features; w_t: (K, Np) pre-cast bf16 weight;
    params: (3, Np) f32 [bias, gamma, beta].  Returns (B, n_out) f32."""
    B, K = x.shape
    K2, Np = w_t.shape
    assert K == K2 and params.shape == (3, Np)

    Mp = _round_up(B, 8)
    if Mp != B:                                   # only pad when actually needed
        x = jnp.pad(x, ((0, Mp - B), (0, 0)))

    if tn is None:
        tn = _pick_tn(Np)
    tn = min(tn, Np)
    assert Np % tn == 0

    kern = functools.partial(_fused_linear_bn_kernel, batch=B, eps=float(eps),
                             apply_bn=(bn_type == 'bn'))

    out = pl.pallas_call(
        kern,
        out_shape=jax.ShapeDtypeStruct((Mp, Np), jnp.float32),
        grid_spec=pltpu.PrefetchScalarGridSpec(
            num_scalar_prefetch=0,
            grid=(Np // tn,),
            in_specs=[
                pl.BlockSpec((Mp, K), lambda j: (0, 0)),   # activations (f32, full K)
                pl.BlockSpec((K, tn), lambda j: (0, j)),   # bf16 pre-transposed weight
                pl.BlockSpec((3, tn), lambda j: (0, j)),   # packed bias/gamma/beta
            ],
            out_specs=pl.BlockSpec((Mp, tn), lambda j: (0, j))),
        compiler_params=pltpu.CompilerParams(
            dimension_semantics=("parallel",)),
    )(x, w_t, params)

    if Mp == B and Np == n_out:
        return out                                # no trailing slice op
    return out[:B, :n_out]


if __name__ == "__main__":
    key = jax.random.PRNGKey(0)
    k_x, k_w, k_b, k_g, k_be = jax.random.split(key, 5)

    batch, feature_dim, bottleneck_dim = 32, 512, 256
    x = jax.random.normal(k_x, (batch, feature_dim), jnp.float32)

    # PyTorch Linear weight layout is (out_features, in_features).
    w = jax.random.normal(k_w, (bottleneck_dim, feature_dim),
                          jnp.float32) / np.sqrt(float(feature_dim))
    bias = 0.01 * jax.random.normal(k_b, (bottleneck_dim,), jnp.float32)
    gamma = 1.0 + 0.1 * jax.random.normal(k_g, (bottleneck_dim,), jnp.float32)
    beta = 0.1 * jax.random.normal(k_be, (bottleneck_dim,), jnp.float32)

    # One-time init: pre-transposed / pre-padded / pre-cast parameters.
    w_t, params, n_out = init_feat_bottleneck_params(w, bias, gamma, beta)
    w_t = jax.block_until_ready(w_t)
    params = jax.block_until_ready(params)

    # --- type='bn' ---
    y_bn = feat_bottleneck_forward(x, w_t, params, n_out, bn_type='bn')
    y_bn = jax.block_until_ready(y_bn)
    assert y_bn.shape == (batch, bottleneck_dim), y_bn.shape
    assert bool(jnp.all(jnp.isfinite(y_bn)))

    # --- type='ori' ---
    y_ori = feat_bottleneck_forward(x, w_t, params, n_out, bn_type='ori')
    y_ori = jax.block_until_ready(y_ori)
    assert y_ori.shape == (batch, bottleneck_dim), y_ori.shape

    # Pure-JAX f32 reference (Linear + training-mode BatchNorm1d, biased variance).
    z_ref = x @ w.T + bias
    mean = jnp.mean(z_ref, axis=0)
    var = jnp.mean(jnp.square(z_ref - mean), axis=0)
    y_bn_ref = (z_ref - mean) * (gamma * lax.rsqrt(var + 1e-5)) + beta

    err_bn = float(jnp.max(jnp.abs(y_bn - y_bn_ref)))
    err_ori = float(jnp.max(jnp.abs(y_ori - z_ref)))
    assert err_bn < 0.1, f"bn max abs err vs reference: {err_bn}"
    assert err_ori < 0.1, f"ori max abs err vs reference: {err_ori}"

    print("KERNEL_OK")
</pallas_src>

<mosaic_0001>
module attributes {stable_mosaic.version = 11 : i64} {
  func.func @_fused_linear_bn_kernel(%arg0: i32, %arg1: memref<32x512xf32, #tpu.memory_space<vmem>>, %arg2: memref<512x256xbf16, #tpu.memory_space<vmem>>, %arg3: memref<3x256xf32, #tpu.memory_space<vmem>>, %arg4: memref<32x256xf32, #tpu.memory_space<vmem>>) attributes {dimension_semantics = [#tpu.dimension_semantics<parallel>], iteration_bounds = array<i64: 1>, scalar_prefetch = 0 : i64, scratch_operands = 0 : i64, tpu.core_type = #tpu.core_type<tc>, window_params = [{pipeline_mode = #tpu.pipeline_mode<synchronous>, transform_indices = @transform_0, window_bounds = array<i64: 32, 512>}, {transform_indices = @transform_1, window_bounds = array<i64: 512, 256>}, {transform_indices = @transform_2, window_bounds = array<i64: 3, 256>}, {transform_indices = @transform_3, window_bounds = array<i64: 32, 256>}]} {
    %c0 = arith.constant 0 : index
    %c0_0 = arith.constant 0 : index
    %0 = vector.load %arg1[%c0, %c0_0] : memref<32x512xf32, #tpu.memory_space<vmem>>, vector<32x512xf32>
    %1 = arith.truncf %0 : vector<32x512xf32> to vector<32x512xbf16>
    %c0_1 = arith.constant 0 : index
    %c0_2 = arith.constant 0 : index
    %2 = vector.load %arg2[%c0_1, %c0_2] : memref<512x256xbf16, #tpu.memory_space<vmem>>, vector<512x256xbf16>
    %cst = arith.constant dense<0.000000e+00> : vector<32x256xf32>
    %3 = tpu.matmul %1, %2, %cst {dimension_numbers = #tpu.dot_dimension_numbers<[1], [0], [0], [1], [0, 0, 1, 1], [], []>} : vector<32x512xbf16>, vector<512x256xbf16>, vector<32x256xf32> -> vector<32x256xf32>
    %c0_3 = arith.constant 0 : index
    %c0_4 = arith.constant 0 : index
    %4 = vector.load %arg3[%c0_3, %c0_4] : memref<3x256xf32, #tpu.memory_space<vmem>>, vector<1x256xf32>
    %5 = vector.broadcast %4 : vector<1x256xf32> to vector<32x256xf32>
    %6 = arith.addf %3, %5 : vector<32x256xf32>
    %7 = tpu.iota {dimensions = array<i32: 0>} : vector<32x256xi32>
    %c32_i32 = arith.constant 32 : i32
    %8 = vector.broadcast %c32_i32 : i32 to vector<32x256xi32>
    %9 = arith.cmpi slt, %7, %8 : vector<32x256xi32>
    %cst_5 = arith.constant 0.000000e+00 : f32
    %10 = vector.broadcast %cst_5 : f32 to vector<32x256xf32>
    %11 = arith.select %9, %6, %10 : vector<32x256xi1>, vector<32x256xf32>
    %cst_6 = arith.constant dense<0.000000e+00> : vector<256xf32>
    %12 = vector.multi_reduction <add>, %11, %cst_6 [0] : vector<32x256xf32> to vector<256xf32>
    %13 = vector.shape_cast %12 : vector<256xf32> to vector<1x256xf32>
    %cst_7 = arith.constant 3.125000e-02 : f32
    %14 = vector.broadcast %cst_7 : f32 to vector<1x256xf32>
    %15 = arith.mulf %13, %14 : vector<1x256xf32>
    %16 = vector.broadcast %15 : vector<1x256xf32> to vector<32x256xf32>
    %17 = arith.subf %6, %16 : vector<32x256xf32>
    %cst_8 = arith.constant 0.000000e+00 : f32
    %18 = vector.broadcast %cst_8 : f32 to vector<32x256xf32>
    %19 = arith.select %9, %17, %18 : vector<32x256xi1>, vector<32x256xf32>
    %20 = arith.mulf %19, %19 : vector<32x256xf32>
    %cst_9 = arith.constant dense<0.000000e+00> : vector<256xf32>
    %21 = vector.multi_reduction <add>, %20, %cst_9 [0] : vector<32x256xf32> to vector<256xf32>
    %22 = vector.shape_cast %21 : vector<256xf32> to vector<1x256xf32>
    %cst_10 = arith.constant 3.125000e-02 : f32
    %23 = vector.broadcast %cst_10 : f32 to vector<1x256xf32>
    %24 = arith.mulf %22, %23 : vector<1x256xf32>
    %cst_11 = arith.constant 9.99999974E-6 : f32
    %25 = vector.broadcast %cst_11 : f32 to vector<1x256xf32>
    %26 = arith.addf %24, %25 : vector<1x256xf32>
    %27 = math.rsqrt %26 : vector<1x256xf32>
    %28 = vector.broadcast %15 : vector<1x256xf32> to vector<32x256xf32>
    %29 = arith.subf %6, %28 : vector<32x256xf32>
    %c1 = arith.constant 1 : index
    %c0_12 = arith.constant 0 : index
    %30 = vector.load %arg3[%c1, %c0_12] : memref<3x256xf32, #tpu.memory_space<vmem>>, vector<1x256xf32>
    %31 = arith.mulf %30, %27 : vector<1x256xf32>
    %32 = vector.broadcast %31 : vector<1x256xf32> to vector<32x256xf32>
    %33 = arith.mulf %29, %32 : vector<32x256xf32>
    %c2 = arith.constant 2 : index
    %c0_13 = arith.constant 0 : index
    %34 = vector.load %arg3[%c2, %c0_13] : memref<3x256xf32, #tpu.memory_space<vmem>>, vector<1x256xf32>
    %35 = vector.broadcast %34 : vector<1x256xf32> to vector<32x256xf32>
    %36 = arith.addf %33, %35 : vector<32x256xf32>
    %c0_14 = arith.constant 0 : index
    %c0_15 = arith.constant 0 : index
    %37 = vector.load %arg4[%c0_14, %c0_15] : memref<32x256xf32, #tpu.memory_space<vmem>>, vector<32x256xf32>
    tpu.vector_store %arg4[%c0_14, %c0_15], %36 {strides = array<i32>} : memref<32x256xf32, #tpu.memory_space<vmem>>, vector<32x256xf32>,
    return
  }
  func.func @transform_0(%arg0: i32) -> (i32, i32) {
    %c0_i32 = arith.constant 0 : i32
    %c0_i32_0 = arith.constant 0 : i32
    %c0_i32_1 = arith.constant 0 : i32
    return %c0_i32, %c0_i32_0 : i32, i32
  }
  func.func @transform_1(%arg0: i32) -> (i32, i32) {
    %c0_i32 = arith.constant 0 : i32
    %c0_i32_0 = arith.constant 0 : i32
    return %c0_i32, %arg0 : i32, i32
  }
  func.func @transform_2(%arg0: i32) -> (i32, i32) {
    %c0_i32 = arith.constant 0 : i32
    %c0_i32_0 = arith.constant 0 : i32
    return %c0_i32, %arg0 : i32, i32
  }
  func.func @transform_3(%arg0: i32) -> (i32, i32) {
    %c0_i32 = arith.constant 0 : i32
    %c0_i32_0 = arith.constant 0 : i32
    return %c0_i32, %arg0 : i32, i32
  }
}

</mosaic_0001>

<llo_original>
// kernel: tpu_custom_call.1
$region0: #{tpu_custom_call.1}
  #allocation0 [shape = 'u32[]', space=smem, size = 0x4, offset = 0x4, fixed_abs, tag = 'smem constant byte address 0x4 - core index']
  #allocation1 [shape = 'u32[72,128]{1,0:T(1,128)}', space=vmem, size = 0x9000, scoped, tag = 'internal scratch']
  %s0 = inlined_call_operand.hbm [shape: f32[32,512], index: 0, kind: input, shape index: {}]
  %s1 = inlined_call_operand.hbm [shape: bf16[512,256], index: 1, kind: input, shape index: {}]
  %s2 = inlined_call_operand.hbm [shape: f32[3,256], index: 2, kind: input, shape index: {}]
  %s3 = inlined_call_operand.hbm [shape: f32[32,256], index: 3, kind: output, shape index: {}]
  %s4 = sld [smem:[#allocation0]]
  $region34: #{tpu_custom_call.1} parent=0
    _
  %s6 = ssub.s32 1, %s4
  %s7 = scalar_select 0, %s6, %s4
  $region1: #{tpu_custom_call.1} parent=0
    #allocation2 [shape = 'u8[65536]{0}', space=vmem, size = 0x10000, scoped, tag = 'input window, operand 0, single buffered']
    #allocation3 [shape = 's32[1]{0}', space=sflag, size = 0x4, scoped, tag = 'scoped memory for tpu_custom_call.1']
    #allocation4 [shape = 's32[1]{0}', space=sflag, size = 0x4, scoped, tag = 'scoped memory for tpu_custom_call.1']
    #allocation5 [shape = 'u8[262144]{0}', space=vmem, size = 0x40000, scoped, tag = 'input window, operand 1, single buffered']
    #allocation6 [shape = 's32[1]{0}', space=sflag, size = 0x4, scoped, tag = 'scoped memory for tpu_custom_call.1']
    #allocation7 [shape = 'u8[4096]{0}', space=vmem, size = 0x1000, scoped, tag = 'input window, operand 2, single buffered']
    #allocation8 [shape = 'u8[32768]{0}', space=vmem, size = 0x8000, scoped, tag = 'output window, operand 0, single buffered']
    %8 = vsyncpa [#allocation3], 0
    %9 = vsyncpa [#allocation6], 0
    %10 = vsyncpa [#allocation4], 0
    // Predicated region
    $region2: #{tpu_custom_call.1} parent=1 // pred_check
      _
    $region3: #{tpu_custom_call.1} parent=1 // pred_check_branch
      %12 = sbr.rel (0) target = $region5
    $region4: #{tpu_custom_call.1} parent=1 // pred_region
      %14 = vsyncadd [#allocation3], 0
      %s15 = sshll.u32 %s0, 4
      %s16 = int_to_ptr.hbm [resolvable:$true] %s15
      %s17 = sshll.u32 [#allocation2], 4
      %s18 = int_to_ptr.vmem [resolvable:$true] %s17
      %23 = dma.hbm_to_vmem [thread:$0]  %s16, 2048, %s18, [#allocation3], 512, 512, 32
    $region5: #{tpu_custom_call.1} parent=1 // pred_fallthru
      _
    // Predicated region
    $region6: #{tpu_custom_call.1} parent=1 // pred_check
      _
    $region7: #{tpu_custom_call.1} parent=1 // pred_check_branch
      %25 = sbr.rel (0) target = $region9
    $region8: #{tpu_custom_call.1} parent=1 // pred_region
      %27 = vsyncadd [#allocation6], 0
      %s28 = sshll.u32 %s1, 4
      %s29 = int_to_ptr.hbm [resolvable:$true] %s28
      %s30 = sshll.u32 [#allocation5], 4
      %s31 = int_to_ptr.vmem [resolvable:$true] %s30
      %36 = dma.hbm_to_vmem [thread:$0]  %s29, 8192, %s31, [#allocation6], 128, 128, 8
    $region9: #{tpu_custom_call.1} parent=1 // pred_fallthru
      _
    // Predicated region
    $region10: #{tpu_custom_call.1} parent=1 // pred_check
      _
    $region11: #{tpu_custom_call.1} parent=1 // pred_check_branch
      %38 = sbr.rel (0) target = $region13
    $region12: #{tpu_custom_call.1} parent=1 // pred_region
      %40 = vsyncadd [#allocation6], 0
      %s42 = sshll.u32 %s2, 4
      %s43 = int_to_ptr.hbm [resolvable:$true] %s42
      %s44 = sshll.u32 [#allocation7], 4
      %s45 = int_to_ptr.vmem [resolvable:$true] %s44
      %47 = dma.hbm_to_vmem [thread:$0]  %s43, 128, %s45, [#allocation6]
    $region13: #{tpu_custom_call.1} parent=1 // pred_fallthru
      _
    // Predicated region
    $region14: #{tpu_custom_call.1} parent=1 // pred_check
      _
    $region15: #{tpu_custom_call.1} parent=1 // pred_check_branch
      %49 = sbr.rel (0) target = $region17
    $region16: #{tpu_custom_call.1} parent=1 // pred_region
      %51 = dma.done [#allocation3], 2048
    $region17: #{tpu_custom_call.1} parent=1 // pred_fallthru
      _
    // Predicated region
    $region18: #{tpu_custom_call.1} parent=1 // pred_check
      _
    $region19: #{tpu_custom_call.1} parent=1 // pred_check_branch
      %53 = sbr.rel (0) target = $region21
    $region20: #{tpu_custom_call.1} parent=1 // pred_region
      %55 = dma.done [#allocation6], 8192
    $region21: #{tpu_custom_call.1} parent=1 // pred_fallthru
      _
    // Predicated region
    $region22: #{tpu_custom_call.1} parent=1 // pred_check
      _
    $region23: #{tpu_custom_call.1} parent=1 // pred_check_branch
      %57 = sbr.rel (0) target = $region25
    $region24: #{tpu_custom_call.1} parent=1 // pred_region
      %59 = dma.done [#allocation6], 128
    $region25: #{tpu_custom_call.1} parent=1 // pred_fallthru
      _
    %v60 = vld [vmem:[#allocation2] sm:$0xff]
    %v61 = vld [vmem:[#allocation2 + $0x8] sm:$0xff]
    %v62 = vld [vmem:[#allocation2 + $0x10] sm:$0xff]
    %v63 = vld [vmem:[#allocation2 + $0x18] sm:$0xff]
    %v64 = vld [vmem:[#allocation2 + $0x20] sm:$0xff]
    %v65 = vld [vmem:[#allocation2 + $0x28] sm:$0xff]
    %v66 = vld [vmem:[#allocation2 + $0x30] sm:$0xff]
    %v67 = vld [vmem:[#allocation2 + $0x38] sm:$0xff]
    %v68 = vld [vmem:[#allocation2 + $0x40] sm:$0xff]
    %v69 = vld [vmem:[#allocation2 + $0x48] sm:$0xff]
    %v70 = vld [vmem:[#allocation2 + $0x50] sm:$0xff]
    %v71 = vld [vmem:[#allocation2 + $0x58] sm:$0xff]
    %v72 = vld [vmem:[#allocation2 + $0x60] sm:$0xff]
    %v73 = vld [vmem:[#allocation2 + $0x68] sm:$0xff]
    %v74 = vld [vmem:[#allocation2 + $0x70] sm:$0xff]
    %v75 = vld [vmem:[#allocation2 + $0x78] sm:$0xff]
    %v76 = vpack.c.bf16 %v64, %v60
    %v77 = vpack.c.bf16 %v65, %v61
    %v78 = vpack.c.bf16 %v66, %v62
    %v79 = vpack.c.bf16 %v67, %v63
    %v80 = vpack.c.bf16 %v72, %v68
    %v81 = vpack.c.bf16 %v73, %v69
    %v82 = vpack.c.bf16 %v74, %v70
    %v83 = vpack.c.bf16 %v75, %v71
    %v84 = vld [vmem:[#allocation5] sm:$0xff]
    %v85 = vld [vmem:[#allocation5 + $0x8] sm:$0xff]
    %v86 = vld [vmem:[#allocation5 + $0x10] sm:$0xff]
    %v87 = vld [vmem:[#allocation5 + $0x18] sm:$0xff]
    %v88 = vld [vmem:[#allocation5 + $0x20] sm:$0xff]
    %v89 = vld [vmem:[#allocation5 + $0x28] sm:$0xff]
    %v90 = vld [vmem:[#allocation5 + $0x30] sm:$0xff]
    %v91 = vld [vmem:[#allocation5 + $0x38] sm:$0xff]
    %v92 = vld [vmem:[#allocation5 + $0x40] sm:$0xff]
    %v93 = vld [vmem:[#allocation5 + $0x48] sm:$0xff]
    %v94 = vld [vmem:[#allocation5 + $0x50] sm:$0xff]
    %v95 = vld [vmem:[#allocation5 + $0x58] sm:$0xff]
    %v96 = vld [vmem:[#allocation5 + $0x60] sm:$0xff]
    %v97 = vld [vmem:[#allocation5 + $0x68] sm:$0xff]
    %v98 = vld [vmem:[#allocation5 + $0x70] sm:$0xff]
    %v99 = vld [vmem:[#allocation5 + $0x78] sm:$0xff]
    %v100 = vld [vmem:[#allocation5 + $0x80] sm:$0xff]
    %v101 = vld [vmem:[#allocation5 + $0x88] sm:$0xff]
    %v102 = vld [vmem:[#allocation5 + $0x90] sm:$0xff]
    %v103 = vld [vmem:[#allocation5 + $0x98] sm:$0xff]
    %v104 = vld [vmem:[#allocation5 + $0xa0] sm:$0xff]
    %v105 = vld [vmem:[#allocation5 + $0xa8] sm:$0xff]
    %v106 = vld [vmem:[#allocation5 + $0xb0] sm:$0xff]
    %v107 = vld [vmem:[#allocation5 + $0xb8] sm:$0xff]
    %v108 = vld [vmem:[#allocation5 + $0xc0] sm:$0xff]
    %v109 = vld [vmem:[#allocation5 + $0xc8] sm:$0xff]
    %v110 = vld [vmem:[#allocation5 + $0xd0] sm:$0xff]
    %v111 = vld [vmem:[#allocation5 + $0xd8] sm:$0xff]
    %v112 = vld [vmem:[#allocation5 + $0xe0] sm:$0xff]
    %v113 = vld [vmem:[#allocation5 + $0xe8] sm:$0xff]
    %v114 = vld [vmem:[#allocation5 + $0xf0] sm:$0xff]
    %v115 = vld [vmem:[#allocation5 + $0xf8] sm:$0xff]
    %v116 = vld [vmem:[#allocation5 + $0x100] sm:$0xff]
    %v117 = vld [vmem:[#allocation5 + $0x108] sm:$0xff]
    %v118 = vld [vmem:[#allocation5 + $0x110] sm:$0xff]
    %v119 = vld [vmem:[#allocation5 + $0x118] sm:$0xff]
    %v120 = vld [vmem:[#allocation5 + $0x120] sm:$0xff]
    %v121 = vld [vmem:[#allocation5 + $0x128] sm:$0xff]
    %v122 = vld [vmem:[#allocation5 + $0x130] sm:$0xff]
    %v123 = vld [vmem:[#allocation5 + $0x138] sm:$0xff]
    %v124 = vld [vmem:[#allocation5 + $0x140] sm:$0xff]
    %v125 = vld [vmem:[#allocation5 + $0x148] sm:$0xff]
    %v126 = vld [vmem:[#allocation5 + $0x150] sm:$0xff]
    %v127 = vld [vmem:[#allocation5 + $0x158] sm:$0xff]
    %v128 = vld [vmem:[#allocation5 + $0x160] sm:$0xff]
    %v129 = vld [vmem:[#allocation5 + $0x168] sm:$0xff]
    %v130 = vld [vmem:[#allocation5 + $0x170] sm:$0xff]
    %v131 = vld [vmem:[#allocation5 + $0x178] sm:$0xff]
    %v132 = vld [vmem:[#allocation5 + $0x180] sm:$0xff]
    %v133 = vld [vmem:[#allocation5 + $0x188] sm:$0xff]
    %v134 = vld [vmem:[#allocation5 + $0x190] sm:$0xff]
    %v135 = vld [vmem:[#allocation5 + $0x198] sm:$0xff]
    %v136 = vld [vmem:[#allocation5 + $0x1a0] sm:$0xff]
    %v137 = vld [vmem:[#allocation5 + $0x1a8] sm:$0xff]
    %v138 = vld [vmem:[#allocation5 + $0x1b0] sm:$0xff]
    %v139 = vld [vmem:[#allocation5 + $0x1b8] sm:$0xff]
    %v140 = vld [vmem:[#allocation5 + $0x1c0] sm:$0xff]
    %v141 = vld [vmem:[#allocation5 + $0x1c8] sm:$0xff]
    %v142 = vld [vmem:[#allocation5 + $0x1d0] sm:$0xff]
    %v143 = vld [vmem:[#allocation5 + $0x1d8] sm:$0xff]
    %v144 = vld [vmem:[#allocation5 + $0x1e0] sm:$0xff]
    %v145 = vld [vmem:[#allocation5 + $0x1e8] sm:$0xff]
    %v146 = vld [vmem:[#allocation5 + $0x1f0] sm:$0xff]
    %v147 = vld [vmem:[#allocation5 + $0x1f8] sm:$0xff]
    %v148 = vld [vmem:[#allocation7] ss:$4 sm:$0x3]
    %v150 = vperm.slane %v148, 0
    %v151 = vperm.slane %v148, 1
    %v218 = vunpack.c.l.b16 %v84
    %v219 = vunpack.c.h.b16 %v84
    %v220 = vunpack.c.l.b16 %v85
    %v221 = vunpack.c.h.b16 %v85
    %v222 = vunpack.c.l.b16 %v86
    %v223 = vunpack.c.h.b16 %v86
    %v224 = vunpack.c.l.b16 %v87
    %v225 = vunpack.c.h.b16 %v87
    %v226 = vunpack.c.l.b16 %v88
    %v227 = vunpack.c.h.b16 %v88
    %v228 = vunpack.c.l.b16 %v89
    %v229 = vunpack.c.h.b16 %v89
    %v230 = vunpack.c.l.b16 %v90
    %v231 = vunpack.c.h.b16 %v90
    %v232 = vunpack.c.l.b16 %v91
    %v233 = vunpack.c.h.b16 %v91
    %v234 = vunpack.c.l.b16 %v92
    %v235 = vunpack.c.h.b16 %v92
    %v236 = vunpack.c.l.b16 %v93
    %v237 = vunpack.c.h.b16 %v93
    %v238 = vunpack.c.l.b16 %v94
    %v239 = vunpack.c.h.b16 %v94
    %v240 = vunpack.c.l.b16 %v95
    %v241 = vunpack.c.h.b16 %v95
    %v242 = vunpack.c.l.b16 %v96
    %v243 = vunpack.c.h.b16 %v96
    %v244 = vunpack.c.l.b16 %v97
    %v245 = vunpack.c.h.b16 %v97
    %v246 = vunpack.c.l.b16 %v98
    %v247 = vunpack.c.h.b16 %v98
    %v248 = vunpack.c.l.b16 %v99
    %v249 = vunpack.c.h.b16 %v99
    %v250 = vunpack.c.l.b16 %v100
    %v251 = vunpack.c.h.b16 %v100
    %v252 = vunpack.c.l.b16 %v101
    %v253 = vunpack.c.h.b16 %v101
    %v254 = vunpack.c.l.b16 %v102
    %v255 = vunpack.c.h.b16 %v102
    %v256 = vunpack.c.l.b16 %v103
    %v257 = vunpack.c.h.b16 %v103
    %v258 = vunpack.c.l.b16 %v104
    %v259 = vunpack.c.h.b16 %v104
    %v260 = vunpack.c.l.b16 %v105
    %v261 = vunpack.c.h.b16 %v105
    %v262 = vunpack.c.l.b16 %v106
    %v263 = vunpack.c.h.b16 %v106
    %v264 = vunpack.c.l.b16 %v107
    %v265 = vunpack.c.h.b16 %v107
    %v266 = vunpack.c.l.b16 %v108
    %v267 = vunpack.c.h.b16 %v108
    %v268 = vunpack.c.l.b16 %v109
    %v269 = vunpack.c.h.b16 %v109
    %v270 = vunpack.c.l.b16 %v110
    %v271 = vunpack.c.h.b16 %v110
    %v272 = vunpack.c.l.b16 %v111
    %v273 = vunpack.c.h.b16 %v111
    %v274 = vunpack.c.l.b16 %v112
    %v275 = vunpack.c.h.b16 %v112
    %v276 = vunpack.c.l.b16 %v113
    %v277 = vunpack.c.h.b16 %v113
    %v278 = vunpack.c.l.b16 %v114
    %v279 = vunpack.c.h.b16 %v114
    %v280 = vunpack.c.l.b16 %v115
    %v281 = vunpack.c.h.b16 %v115
    %v282 = vunpack.c.l.b16 %v116
    %v283 = vunpack.c.h.b16 %v116
    %v284 = vunpack.c.l.b16 %v117
    %v285 = vunpack.c.h.b16 %v117
    %v286 = vunpack.c.l.b16 %v118
    %v287 = vunpack.c.h.b16 %v118
    %v288 = vunpack.c.l.b16 %v119
    %v289 = vunpack.c.h.b16 %v119
    %v290 = vunpack.c.l.b16 %v120
    %v291 = vunpack.c.h.b16 %v120
    %v292 = vunpack.c.l.b16 %v121
    %v293 = vunpack.c.h.b16 %v121
    %v294 = vunpack.c.l.b16 %v122
    %v295 = vunpack.c.h.b16 %v122
    %v296 = vunpack.c.l.b16 %v123
    %v297 = vunpack.c.h.b16 %v123
    %v298 = vunpack.c.l.b16 %v124
    %v299 = vunpack.c.h.b16 %v124
    %v300 = vunpack.c.l.b16 %v125
    %v301 = vunpack.c.h.b16 %v125
    %v302 = vunpack.c.l.b16 %v126
    %v303 = vunpack.c.h.b16 %v126
    %v304 = vunpack.c.l.b16 %v127
    %v305 = vunpack.c.h.b16 %v127
    %v306 = vunpack.c.l.b16 %v128
    %v307 = vunpack.c.h.b16 %v128
    %v308 = vunpack.c.l.b16 %v129
    %v309 = vunpack.c.h.b16 %v129
    %v310 = vunpack.c.l.b16 %v130
    %v311 = vunpack.c.h.b16 %v130
    %v312 = vunpack.c.l.b16 %v131
    %v313 = vunpack.c.h.b16 %v131
    %v314 = vunpack.c.l.b16 %v132
    %v315 = vunpack.c.h.b16 %v132
    %v316 = vunpack.c.l.b16 %v133
    %v317 = vunpack.c.h.b16 %v133
    %v318 = vunpack.c.l.b16 %v134
    %v319 = vunpack.c.h.b16 %v134
    %v320 = vunpack.c.l.b16 %v135
    %v321 = vunpack.c.h.b16 %v135
    %v322 = vunpack.c.l.b16 %v136
    %v323 = vunpack.c.h.b16 %v136
    %v324 = vunpack.c.l.b16 %v137
    %v325 = vunpack.c.h.b16 %v137
    %v326 = vunpack.c.l.b16 %v138
    %v327 = vunpack.c.h.b16 %v138
    %v328 = vunpack.c.l.b16 %v139
    %v329 = vunpack.c.h.b16 %v139
    %v330 = vunpack.c.l.b16 %v140
    %v331 = vunpack.c.h.b16 %v140
    %v332 = vunpack.c.l.b16 %v141
    %v333 = vunpack.c.h.b16 %v141
    %v334 = vunpack.c.l.b16 %v142
    %v335 = vunpack.c.h.b16 %v142
    %v336 = vunpack.c.l.b16 %v143
    %v337 = vunpack.c.h.b16 %v143
    %v338 = vunpack.c.l.b16 %v144
    %v339 = vunpack.c.h.b16 %v144
    %v340 = vunpack.c.l.b16 %v145
    %v341 = vunpack.c.h.b16 %v145
    %v342 = vunpack.c.l.b16 %v146
    %v343 = vunpack.c.h.b16 %v146
    %v344 = vunpack.c.l.b16 %v147
    %v345 = vunpack.c.h.b16 %v147
    %v346 = vpack.c.b16 %v220, %v218
    %v347 = vpack.c.b16 %v221, %v219
    %v348 = vpack.c.b16 %v224, %v222
    %v349 = vpack.c.b16 %v225, %v223
    %v350 = vpack.c.b16 %v228, %v226
    %v351 = vpack.c.b16 %v229, %v227
    %v352 = vpack.c.b16 %v232, %v230
    %v353 = vpack.c.b16 %v233, %v231
    %v354 = vpack.c.b16 %v236, %v234
    %v355 = vpack.c.b16 %v237, %v235
    %v356 = vpack.c.b16 %v240, %v238
    %v357 = vpack.c.b16 %v241, %v239
    %v358 = vpack.c.b16 %v244, %v242
    %v359 = vpack.c.b16 %v245, %v243
    %v360 = vpack.c.b16 %v248, %v246
    %v361 = vpack.c.b16 %v249, %v247
    %v362 = vpack.c.b16 %v252, %v250
    %v363 = vpack.c.b16 %v253, %v251
    %v364 = vpack.c.b16 %v256, %v254
    %v365 = vpack.c.b16 %v257, %v255
    %v366 = vpack.c.b16 %v260, %v258
    %v367 = vpack.c.b16 %v261, %v259
    %v368 = vpack.c.b16 %v264, %v262
    %v369 = vpack.c.b16 %v265, %v263
    %v370 = vpack.c.b16 %v268, %v266
    %v371 = vpack.c.b16 %v269, %v267
    %v372 = vpack.c.b16 %v272, %v270
    %v373 = vpack.c.b16 %v273, %v271
    %v374 = vpack.c.b16 %v276, %v274
    %v375 = vpack.c.b16 %v277, %v275
    %v376 = vpack.c.b16 %v280, %v278
    %v377 = vpack.c.b16 %v281, %v279
    %v378 = vpack.c.b16 %v284, %v282
    %v379 = vpack.c.b16 %v285, %v283
    %v380 = vpack.c.b16 %v288, %v286
    %v381 = vpack.c.b16 %v289, %v287
    %v382 = vpack.c.b16 %v292, %v290
    %v383 = vpack.c.b16 %v293, %v291
    %v384 = vpack.c.b16 %v296, %v294
    %v385 = vpack.c.b16 %v297, %v295
    %v386 = vpack.c.b16 %v300, %v298
    %v387 = vpack.c.b16 %v301, %v299
    %v388 = vpack.c.b16 %v304, %v302
    %v389 = vpack.c.b16 %v305, %v303
    %v390 = vpack.c.b16 %v308, %v306
    %v391 = vpack.c.b16 %v309, %v307
    %v392 = vpack.c.b16 %v312, %v310
    %v393 = vpack.c.b16 %v313, %v311
    %v394 = vpack.c.b16 %v316, %v314
    %v395 = vpack.c.b16 %v317, %v315
    %v396 = vpack.c.b16 %v320, %v318
    %v397 = vpack.c.b16 %v321, %v319
    %v398 = vpack.c.b16 %v324, %v322
    %v399 = vpack.c.b16 %v325, %v323
    %v400 = vpack.c.b16 %v328, %v326
    %v401 = vpack.c.b16 %v329, %v327
    %v402 = vpack.c.b16 %v332, %v330
    %v403 = vpack.c.b16 %v333, %v331
    %v404 = vpack.c.b16 %v336, %v334
    %v405 = vpack.c.b16 %v337, %v335
    %v406 = vpack.c.b16 %v340, %v338
    %v407 = vpack.c.b16 %v341, %v339
    %v408 = vpack.c.b16 %v344, %v342
    %v409 = vpack.c.b16 %v345, %v343
    %474 = vmatpush.bf16.msra.mxu0 %v360
    %475 = vmatpush.bf16.msra.mxu0 %v358
    %476 = vmatpush.bf16.msra.mxu0 %v356
    %477 = vmatpush.bf16.msra.mxu0 %v354
    %478 = vmatpush.bf16.msra.mxu0 %v352
    %479 = vmatpush.bf16.msra.mxu0 %v350
    %480 = vmatpush.bf16.msra.mxu0 %v348
    %481 = vmatpush.bf16.msra.mxu0 %v346
    %482 = vmatmul.bf16.gmra.mxu0 %v76
    %v483 = vpop.f32.mrf.mxu0
    %v484 = vadd.f32 %v150, %v483
    %v485 = vpop.f32.mrf.mxu0
    %v486 = vadd.f32 %v150, %v485
    %487 = vmatmul.bf16.gmra.mxu0 %v80
    %v488 = vpop.f32.mrf.mxu0
    %v489 = vadd.f32 %v150, %v488
    %v490 = vpop.f32.mrf.mxu0
    %v491 = vadd.f32 %v150, %v490
    %492 = vdwg.mxu0
    %493 = vmatpush.bf16.msra.mxu0 %v376
    %494 = vmatpush.bf16.msra.mxu0 %v374
    %495 = vmatpush.bf16.msra.mxu0 %v372
    %496 = vmatpush.bf16.msra.mxu0 %v370
    %497 = vmatpush.bf16.msra.mxu0 %v368
    %498 = vmatpush.bf16.msra.mxu0 %v366
    %499 = vmatpush.bf16.msra.mxu0 %v364
    %500 = vmatpush.bf16.msra.mxu0 %v362
    %501 = vmatmul.bf16.gmra.mxu0 %v77
    %v502 = vpop.f32.mrf.mxu0
    %v503 = vadd.f32 %v484, %v502
    %v504 = vpop.f32.mrf.mxu0
    %v505 = vadd.f32 %v486, %v504
    %506 = vmatmul.bf16.gmra.mxu0 %v81
    %v507 = vpop.f32.mrf.mxu0
    %v508 = vadd.f32 %v489, %v507
    %v509 = vpop.f32.mrf.mxu0
    %v510 = vadd.f32 %v491, %v509
    %511 = vdwg.mxu0
    %512 = vmatpush.bf16.msra.mxu0 %v392
    %513 = vmatpush.bf16.msra.mxu0 %v390
    %514 = vmatpush.bf16.msra.mxu0 %v388
    %515 = vmatpush.bf16.msra.mxu0 %v386
    %516 = vmatpush.bf16.msra.mxu0 %v384
    %517 = vmatpush.bf16.msra.mxu0 %v382
    %518 = vmatpush.bf16.msra.mxu0 %v380
    %519 = vmatpush.bf16.msra.mxu0 %v378
    %520 = vmatmul.bf16.gmra.mxu0 %v78
    %v521 = vpop.f32.mrf.mxu0
    %v522 = vadd.f32 %v503, %v521
    %v523 = vpop.f32.mrf.mxu0
    %v524 = vadd.f32 %v505, %v523
    %525 = vmatmul.bf16.gmra.mxu0 %v82
    %v526 = vpop.f32.mrf.mxu0
    %v527 = vadd.f32 %v508, %v526
    %v528 = vpop.f32.mrf.mxu0
    %v529 = vadd.f32 %v510, %v528
    %530 = vdwg.mxu0
    %531 = vmatpush.bf16.msra.mxu0 %v408
    %532 = vmatpush.bf16.msra.mxu0 %v406
    %533 = vmatpush.bf16.msra.mxu0 %v404
    %534 = vmatpush.bf16.msra.mxu0 %v402
    %535 = vmatpush.bf16.msra.mxu0 %v400
    %536 = vmatpush.bf16.msra.mxu0 %v398
    %537 = vmatpush.bf16.msra.mxu0 %v396
    %538 = vmatpush.bf16.msra.mxu0 %v394
    %539 = vmatmul.bf16.gmra.mxu0 %v79
    %v540 = vpop.f32.mrf.mxu0
    %v541 = vadd.f32 %v522, %v540
    %v542 = vpop.f32.mrf.mxu0
    %v543 = vadd.f32 %v524, %v542
    %544 = vmatmul.bf16.gmra.mxu0 %v83
    %v545 = vpop.f32.mrf.mxu0
    %v546 = vadd.f32 %v527, %v545
    %v547 = vpop.f32.mrf.mxu0
    %v548 = vadd.f32 %v529, %v547
    %549 = vdwg.mxu0
    %550 = vmatpush.bf16.msra.mxu0 %v361
    %551 = vmatpush.bf16.msra.mxu0 %v359
    %552 = vmatpush.bf16.msra.mxu0 %v357
    %553 = vmatpush.bf16.msra.mxu0 %v355
    %554 = vmatpush.bf16.msra.mxu0 %v353
    %555 = vmatpush.bf16.msra.mxu0 %v351
    %556 = vmatpush.bf16.msra.mxu0 %v349
    %557 = vmatpush.bf16.msra.mxu0 %v347
    %558 = vmatmul.bf16.gmra.mxu0 %v76
    %v559 = vpop.f32.mrf.mxu0
    %v560 = vadd.f32 %v151, %v559
    %v561 = vpop.f32.mrf.mxu0
    %v562 = vadd.f32 %v151, %v561
    %563 = vmatmul.bf16.gmra.mxu0 %v80
    %v564 = vpop.f32.mrf.mxu0
    %v565 = vadd.f32 %v151, %v564
    %v566 = vpop.f32.mrf.mxu0
    %v567 = vadd.f32 %v151, %v566
    %568 = vdwg.mxu0
    %569 = vmatpush.bf16.msra.mxu0 %v377
    %570 = vmatpush.bf16.msra.mxu0 %v375
    %571 = vmatpush.bf16.msra.mxu0 %v373
    %572 = vmatpush.bf16.msra.mxu0 %v371
    %573 = vmatpush.bf16.msra.mxu0 %v369
    %574 = vmatpush.bf16.msra.mxu0 %v367
    %575 = vmatpush.bf16.msra.mxu0 %v365
    %576 = vmatpush.bf16.msra.mxu0 %v363
    %577 = vmatmul.bf16.gmra.mxu0 %v77
    %v578 = vpop.f32.mrf.mxu0
    %v579 = vadd.f32 %v560, %v578
    %v580 = vpop.f32.mrf.mxu0
    %v581 = vadd.f32 %v562, %v580
    %582 = vmatmul.bf16.gmra.mxu0 %v81
    %v583 = vpop.f32.mrf.mxu0
    %v584 = vadd.f32 %v565, %v583
    %v585 = vpop.f32.mrf.mxu0
    %v586 = vadd.f32 %v567, %v585
    %587 = vdwg.mxu0
    %588 = vmatpush.bf16.msra.mxu0 %v393
    %589 = vmatpush.bf16.msra.mxu0 %v391
    %590 = vmatpush.bf16.msra.mxu0 %v389
    %591 = vmatpush.bf16.msra.mxu0 %v387
    %592 = vmatpush.bf16.msra.mxu0 %v385
    %593 = vmatpush.bf16.msra.mxu0 %v383
    %594 = vmatpush.bf16.msra.mxu0 %v381
    %595 = vmatpush.bf16.msra.mxu0 %v379
    %596 = vmatmul.bf16.gmra.mxu0 %v78
    %v597 = vpop.f32.mrf.mxu0
    %v598 = vadd.f32 %v579, %v597
    %v599 = vpop.f32.mrf.mxu0
    %v600 = vadd.f32 %v581, %v599
    %601 = vmatmul.bf16.gmra.mxu0 %v82
    %v602 = vpop.f32.mrf.mxu0
    %v603 = vadd.f32 %v584, %v602
    %v604 = vpop.f32.mrf.mxu0
    %v605 = vadd.f32 %v586, %v604
    %606 = vdwg.mxu0
    %607 = vmatpush.bf16.msra.mxu0 %v409
    %608 = vmatpush.bf16.msra.mxu0 %v407
    %609 = vmatpush.bf16.msra.mxu0 %v405
    %610 = vmatpush.bf16.msra.mxu0 %v403
    %611 = vmatpush.bf16.msra.mxu0 %v401
    %612 = vmatpush.bf16.msra.mxu0 %v399
    %613 = vmatpush.bf16.msra.mxu0 %v397
    %614 = vmatpush.bf16.msra.mxu0 %v395
    %615 = vmatmul.bf16.gmra.mxu0 %v79
    %v616 = vpop.f32.mrf.mxu0
    %v617 = vadd.f32 %v598, %v616
    %v618 = vpop.f32.mrf.mxu0
    %v619 = vadd.f32 %v600, %v618
    %620 = vmatmul.bf16.gmra.mxu0 %v83
    %v621 = vpop.f32.mrf.mxu0
    %v622 = vadd.f32 %v603, %v621
    %v623 = vpop.f32.mrf.mxu0
    %v624 = vadd.f32 %v605, %v623
    %625 = vdwg.mxu0
    %v626 = vlaneseq
    %v627 = vshrl.u32 %v626, 7
    %v628 = vadd.s32 %v627, 8
    %v629 = vadd.s32 %v627, 16
    %v630 = vadd.s32 %v627, 24
    %vm631 = vcmp.lt.s32.totalorder %v627, 32
    %vm632 = vcmp.lt.s32.totalorder %v628, 32
    %vm633 = vcmp.lt.s32.totalorder %v629, 32
    %vm634 = vcmp.lt.s32.totalorder %v630, 32
    %v635 = vsel %vm631, %v541, 0.0
    %v636 = vsel %vm631, %v617, 0.0
    %v637 = vsel %vm632, %v543, 0.0
    %v638 = vsel %vm632, %v619, 0.0
    %v639 = vsel %vm633, %v546, 0.0
    %v640 = vsel %vm633, %v622, 0.0
    %v641 = vsel %vm634, %v548, 0.0
    %v642 = vsel %vm634, %v624, 0.0
    %v643 = vadd.f32 %v635, %v637
    %v644 = vadd.f32 %v643, %v639
    %v645 = vadd.f32 %v644, %v641
    %v646 = vrot.slane %v645, 4
    %v647 = vadd.f32 %v645, %v646
    %v648 = vrot.slane %v647, 2
    %v649 = vadd.f32 %v647, %v648
    %v650 = vrot.slane %v649, 1
    %v651 = vadd.f32 %v649, %v650
    %v652 = vadd.f32 %v636, %v638
    %v653 = vadd.f32 %v652, %v640
    %v654 = vadd.f32 %v653, %v642
    %v655 = vrot.slane %v654, 4
    %v656 = vadd.f32 %v654, %v655
    %v657 = vrot.slane %v656, 2
    %v658 = vadd.f32 %v656, %v657
    %v659 = vrot.slane %v658, 1
    %v660 = vadd.f32 %v658, %v659
    %v661 = vmul.f32 %v651, 0.03125
    %v662 = vmul.f32 %v660, 0.03125
    %v663 = vsub.f32 %v541, %v661
    %v664 = vsub.f32 %v617, %v662
    %v665 = vsub.f32 %v543, %v661
    %v666 = vsub.f32 %v619, %v662
    %v667 = vsub.f32 %v546, %v661
    %v668 = vsub.f32 %v622, %v662
    %v669 = vsub.f32 %v548, %v661
    %v670 = vsub.f32 %v624, %v662
    %v671 = vsel %vm631, %v663, 0.0
    %v672 = vsel %vm631, %v664, 0.0
    %v673 = vsel %vm632, %v665, 0.0
    %v674 = vsel %vm632, %v666, 0.0
    %v675 = vsel %vm633, %v667, 0.0
    %v676 = vsel %vm633, %v668, 0.0
    %v677 = vsel %vm634, %v669, 0.0
    %v678 = vsel %vm634, %v670, 0.0
    %v679 = vmul.f32 %v671, %v671
    %v680 = vmul.f32 %v672, %v672
    %v681 = vmul.f32 %v673, %v673
    %v682 = vmul.f32 %v674, %v674
    %v683 = vmul.f32 %v675, %v675
    %v684 = vmul.f32 %v676, %v676
    %v685 = vmul.f32 %v677, %v677
    %v686 = vmul.f32 %v678, %v678
    %v687 = vadd.f32 %v679, %v681
    %v688 = vadd.f32 %v687, %v683
    %v689 = vadd.f32 %v688, %v685
    %v690 = vrot.slane %v689, 4
    %v691 = vadd.f32 %v689, %v690
    %v692 = vrot.slane %v691, 2
    %v693 = vadd.f32 %v691, %v692
    %v694 = vrot.slane %v693, 1
    %v695 = vadd.f32 %v693, %v694
    %v696 = vadd.f32 %v680, %v682
    %v697 = vadd.f32 %v696, %v684
    %v698 = vadd.f32 %v697, %v686
    %v699 = vrot.slane %v698, 4
    %v700 = vadd.f32 %v698, %v699
    %v701 = vrot.slane %v700, 2
    %v702 = vadd.f32 %v700, %v701
    %v703 = vrot.slane %v702, 1
    %v704 = vadd.f32 %v702, %v703
    %v705 = vmul.f32 %v695, 0.03125
    %v706 = vmul.f32 %v704, 0.03125
    %v707 = vadd.f32 %v705, 1e-05
    %v708 = vadd.f32 %v706, 1e-05
    %v709 = vrsqrt.pop %v707
    %v710 = vmul.f32 %v709, %v707
    %v711 = vmul.f32 %v710, %v709
    %v712 = vmul.f32 0.5, %v711
    %v713 = vsub.f32 1.5, %v712
    %v714 = vmul.f32 %v709, %v713
    %vm715 = vweird.f32 %v707
    %vm716 = vweird.f32 %v709
    %vm717 = vmor %vm715, %vm716
    %v718 = vsel %vm717, %v709, %v714
    %v719 = vrsqrt.pop %v708
    %v720 = vmul.f32 %v719, %v708
    %v721 = vmul.f32 %v720, %v719
    %v722 = vmul.f32 0.5, %v721
    %v723 = vsub.f32 1.5, %v722
    %v724 = vmul.f32 %v719, %v723
    %vm725 = vweird.f32 %v708
    %vm726 = vweird.f32 %v719
    %vm727 = vmor %vm725, %vm726
    %v728 = vsel %vm727, %v719, %v724
    %s729 = scalar_lea.vmem [#allocation7], 1
    %v730 = vld [vmem:[%s729] ss:$4 sm:$0x3]
    %v733 = vrot.slane %v728, 7
    %vm734 = vcmask 1040384
    %v735 = vsel %vm734, %v718, %v733
    %v737 = vmul.f32 %v730, %v735
    %v739 = vperm.slane %v737, 0
    %v740 = vperm.slane %v737, 1
    %v743 = vmul.f32 %v663, %v739
    %v744 = vmul.f32 %v664, %v740
    %v745 = vmul.f32 %v665, %v739
    %v746 = vmul.f32 %v666, %v740
    %v747 = vmul.f32 %v667, %v739
    %v748 = vmul.f32 %v668, %v740
    %v749 = vmul.f32 %v669, %v739
    %v750 = vmul.f32 %v670, %v740
    %s751 = scalar_lea.vmem [#allocation7], 2
    %v752 = vld [vmem:[%s751] ss:$4 sm:$0x3]
    %v754 = vperm.slane %v752, 0
    %v755 = vperm.slane %v752, 1
    %v758 = vadd.f32 %v743, %v754
    %v759 = vadd.f32 %v744, %v755
    %v760 = vadd.f32 %v745, %v754
    %v761 = vadd.f32 %v746, %v755
    %v762 = vadd.f32 %v747, %v754
    %v763 = vadd.f32 %v748, %v755
    %v764 = vadd.f32 %v749, %v754
    %v765 = vadd.f32 %v750, %v755
    %766 = vst [vmem:[#allocation8] sm:$0xff] %v758
    %767 = vst [vmem:[#allocation8 + $0x8] sm:$0xff] %v759
    %768 = vst [vmem:[#allocation8 + $0x10] sm:$0xff] %v760
    %769 = vst [vmem:[#allocation8 + $0x18] sm:$0xff] %v761
    %770 = vst [vmem:[#allocation8 + $0x20] sm:$0xff] %v762
    %771 = vst [vmem:[#allocation8 + $0x28] sm:$0xff] %v763
    %772 = vst [vmem:[#allocation8 + $0x30] sm:$0xff] %v764
    %773 = vst [vmem:[#allocation8 + $0x38] sm:$0xff] %v765
    // Predicated region
    $region26: #{tpu_custom_call.1} parent=1 // pred_check
      _
    $region27: #{tpu_custom_call.1} parent=1 // pred_check_branch
      %775 = sbr.rel (0) target = $region29
    $region28: #{tpu_custom_call.1} parent=1 // pred_region
      %777 = vsyncadd [#allocation4], 0
      %s778 = sshll.u32 [#allocation8], 4
      %s779 = int_to_ptr.vmem [resolvable:$true] %s778
      %s780 = sshll.u32 %s3, 4
      %s781 = int_to_ptr.hbm [resolvable:$true] %s780
      %786 = dma.vmem_to_hbm [thread:$0]  %s779, 1024, %s781, [#allocation4], 256, 256, 16
    $region29: #{tpu_custom_call.1} parent=1 // pred_fallthru
      _
    // Predicated region
    $region30: #{tpu_custom_call.1} parent=1 // pred_check
      _
    $region31: #{tpu_custom_call.1} parent=1 // pred_check_branch
      %788 = sbr.rel (0) target = $region33
    $region32: #{tpu_custom_call.1} parent=1 // pred_region
      %790 = dma.done [#allocation4], 1024
    $region33: #{tpu_custom_call.1} parent=1 // pred_fallthru
      _
    %791 = vsyncpa [#allocation3], 1
    %792 = vsyncpa [#allocation6], 1
    %793 = vsyncpa [#allocation4], 1

</llo_original>
